<compile_context>
chip_gen: v7x
topology: tpu7x:2x2x1
jax: 0.10.0
libtpu: 0.0.40
codegen_flags: <defaults>
</compile_context>

<pallas_src>
import functools

import jax
import jax.numpy as jnp
from jax import lax
from jax.experimental import pallas as pl
from jax.experimental.pallas import tpu as pltpu

C_IN = 3
C_OUT = 6
C_OUT_PAD = 8          # MXU LHS rows padded to one sublane tile
KSIZE = 5
PAD = 2
TAPS = KSIZE * KSIZE   # 25
K_STACK = TAPS * 8     # 200: each tap gets an aligned 8-sublane group (3 real + 5 zero rows)
LC_MAX = 512           # in-kernel lane-chunk size (bounds vregs + im2col scratch)


def _conv_kernel(x_ref, w_ref, b_ref, o_ref, imc_ref, *, wp, lout, lc):
    """One image per grid step.

    x_ref:   (1, 3, lin)   spatially padded input, flattened with row stride wp
    w_ref:   (8, 200)      weights; column 8*t + c  <-  conv_w[co, c, kh, kw], t = kh*5 + kw
    b_ref:   (8, 1)        conv bias + `params` bias (rows 6..7 zero)
    o_ref:   (1, 6, lout)  relu(conv + bias); lane p = h*wp + w (columns w >= W are garbage,
                           sliced off by the wrapper)
    imc_ref: (200, lc)     VMEM im2col scratch (K-stacked taps)
    """
    halo = (KSIZE - 1) * wp + (KSIZE - 1)
    # Pad sublanes of the scratch must be exact zeros (stale VMEM may hold NaNs); zero once
    # per grid step — the data writes below never touch those rows. (Not gated on
    # program_id==0 because the grid axis is "parallel" and scratch is per-core.)
    imc_ref[...] = jnp.zeros_like(imc_ref)
    w = w_ref[...]                                     # VMEM-resident, lane-dense
    b = b_ref[...]
    for off in range(0, lout, lc):                     # static lane-chunk loop
        cur = min(lc, lout - off)
        xw = x_ref[0, :, off:off + cur + halo]         # (3, cur+halo), loaded once per chunk
        for kh in range(KSIZE):
            for kw in range(KSIZE):
                t = kh * KSIZE + kw
                d = kh * wp + kw                       # static lane shift of this tap
                imc_ref[8 * t:8 * t + C_IN, :cur] = xw[:, d:d + cur]
        # One deep-contraction MXU matmul per chunk (K=200 vs. 25 separate K=8 dots).
        res = jnp.dot(w, imc_ref[:, :cur], preferred_element_type=jnp.float32)   # (8, cur)
        y = jnp.maximum(res[:C_OUT] + b[:C_OUT], 0.0)
        o_ref[0, :, off:off + cur] = y.astype(o_ref.dtype)


@jax.jit
def model_forward(x_nchw, conv_w, conv_b, lin_b):
    """x_nchw: (N, 3, H, W) f32. Returns relu(conv2d(x) + (conv_b + lin_b)) as (N, 6, H, W)."""
    N, C, H, W = x_nchw.shape
    assert C == C_IN
    Wp = W + 2 * PAD
    lout = H * Wp                        # multiple of Wp -> single strided slice at the end
    lin = (H + 2 * PAD + 1) * Wp         # one extra zero row covers the last tap's halo read
    lc = min(LC_MAX, lout)

    # Single wrapper-side pad (conv zero-pad + 1 halo row); flattening reshape is contiguous
    # (free) and channels stay at 3 (no zero rows DMA'd from HBM).
    xp = jnp.pad(x_nchw, ((0, 0), (0, 0), (PAD, PAD + 1), (PAD, PAD)))
    xf = xp.reshape(N, C_IN, lin)

    # Lane-dense resident weights: (8, 200), column index 8*t + c.
    wt = conv_w.transpose(0, 2, 3, 1).reshape(C_OUT, TAPS, C_IN)
    wt = jnp.pad(wt, ((0, C_OUT_PAD - C_OUT), (0, 0), (0, 8 - C_IN)))
    wt = wt.reshape(C_OUT_PAD, K_STACK)

    # Fused bias: conv bias + bias of the `params` Linear module.
    bias = jnp.pad((conv_b + lin_b).reshape(C_OUT, 1), ((0, C_OUT_PAD - C_OUT), (0, 0)))

    kern = functools.partial(_conv_kernel, wp=Wp, lout=lout, lc=lc)
    out = pl.pallas_call(
        kern,
        out_shape=jax.ShapeDtypeStruct((N, C_OUT, lout), jnp.float32),
        grid=(N,),
        in_specs=[
            pl.BlockSpec((1, C_IN, lin), lambda n: (n, 0, 0)),        # one image / step
            pl.BlockSpec((C_OUT_PAD, K_STACK), lambda n: (0, 0)),     # resident weights
            pl.BlockSpec((C_OUT_PAD, 1), lambda n: (0, 0)),           # resident bias
        ],
        out_specs=pl.BlockSpec((1, C_OUT, lout), lambda n: (n, 0, 0)),
        scratch_shapes=[pltpu.VMEM((K_STACK, lc), jnp.float32)],
        compiler_params=pltpu.CompilerParams(
            dimension_semantics=("parallel",),   # v7x: images across both TensorCores
        ),
    )(xf, wt, bias)

    # Single post-kernel copy: reshape is contiguous/free, slice drops the stride-pad columns.
    return out.reshape(N, C_OUT, H, Wp)[..., :W]


def _reference(x, conv_w, conv_b, lin_b):
    ref = lax.conv_general_dilated(
        x, conv_w, window_strides=(1, 1), padding=((PAD, PAD), (PAD, PAD)),
        dimension_numbers=("NCHW", "OIHW", "NCHW"),
        precision=lax.Precision.HIGHEST)
    return jnp.maximum(ref + (conv_b + lin_b)[None, :, None, None], 0.0)


if __name__ == "__main__":
    key = jax.random.PRNGKey(0)
    k_x, k_x2, k_w, k_b, k_lb = jax.random.split(key, 5)

    # Deterministic parameter init (fan-in uniform, like PyTorch defaults).
    fan_in_conv = C_IN * KSIZE * KSIZE
    bc = 1.0 / (fan_in_conv ** 0.5)
    conv_w = jax.random.uniform(k_w, (C_OUT, C_IN, KSIZE, KSIZE),
                                minval=-bc, maxval=bc, dtype=jnp.float32)
    conv_b = jax.random.uniform(k_b, (C_OUT,), minval=-bc, maxval=bc, dtype=jnp.float32)
    bl = 1.0 / (10 ** 0.5)  # Linear(10, 6) bias bound
    lin_b = jax.random.uniform(k_lb, (C_OUT,), minval=-bl, maxval=bl, dtype=jnp.float32)

    # Small shapes consistent with the module: batch=2, 3 channels, 16x16 spatial.
    x1 = jax.random.normal(k_x, (2, 3, 16, 16), dtype=jnp.float32)
    out = model_forward(x1, conv_w, conv_b, lin_b)
    jax.block_until_ready(out)
    assert out.shape == (2, C_OUT, 16, 16), out.shape
    ref = _reference(x1, conv_w, conv_b, lin_b)
    err = float(jnp.max(jnp.abs(out - ref)))
    # MXU accumulates in f32; tolerance covers any bf16-pass mantissa loss in the products.
    assert jnp.allclose(out, ref, atol=1e-2, rtol=1e-2), err

    # Also exercise the spec's original (odd) input shape (1, 3, 7, 4).
    x2 = jax.random.normal(k_x2, (1, 3, 7, 4), dtype=jnp.float32)
    out2 = model_forward(x2, conv_w, conv_b, lin_b)
    jax.block_until_ready(out2)
    assert out2.shape == (1, C_OUT, 7, 4), out2.shape
    ref2 = _reference(x2, conv_w, conv_b, lin_b)
    err2 = float(jnp.max(jnp.abs(out2 - ref2)))
    assert jnp.allclose(out2, ref2, atol=1e-2, rtol=1e-2), err2

    print("KERNEL_OK")
</pallas_src>

<mosaic_0001>
module attributes {stable_mosaic.version = 11 : i64} {
  func.func @_conv_kernel(%arg0: i32, %arg1: memref<1x3x420xf32, #tpu.memory_space<vmem>>, %arg2: memref<8x200xf32, #tpu.memory_space<vmem>>, %arg3: memref<8x1xf32, #tpu.memory_space<vmem>>, %arg4: memref<1x6x320xf32, #tpu.memory_space<vmem>>, %arg5: memref<200x320xf32, #tpu.memory_space<vmem>>) attributes {dimension_semantics = [#tpu.dimension_semantics<parallel>], iteration_bounds = array<i64: 2>, scalar_prefetch = 0 : i64, scratch_operands = 1 : i64, tpu.core_type = #tpu.core_type<tc>, window_params = [{transform_indices = @transform_0, window_bounds = array<i64: 1, 3, 420>}, {pipeline_mode = #tpu.pipeline_mode<synchronous>, transform_indices = @transform_1, window_bounds = array<i64: 8, 200>}, {pipeline_mode = #tpu.pipeline_mode<synchronous>, transform_indices = @transform_2, window_bounds = array<i64: 8, 1>}, {transform_indices = @transform_3, window_bounds = array<i64: 1, 6, 320>}]} {
    %cst = arith.constant 0.000000e+00 : f32
    %0 = vector.broadcast %cst : f32 to vector<200x320xf32>
    %c0 = arith.constant 0 : index
    %c0_0 = arith.constant 0 : index
    %1 = vector.load %arg5[%c0, %c0_0] : memref<200x320xf32, #tpu.memory_space<vmem>>, vector<200x320xf32>
    tpu.vector_store %arg5[%c0, %c0_0], %0 {strides = array<i32>} : memref<200x320xf32, #tpu.memory_space<vmem>>, vector<200x320xf32>,
    %c0_1 = arith.constant 0 : index
    %c0_2 = arith.constant 0 : index
    %2 = vector.load %arg2[%c0_1, %c0_2] : memref<8x200xf32, #tpu.memory_space<vmem>>, vector<8x200xf32>
    %c0_3 = arith.constant 0 : index
    %c0_4 = arith.constant 0 : index
    %3 = vector.load %arg3[%c0_3, %c0_4] : memref<8x1xf32, #tpu.memory_space<vmem>>, vector<8x1xf32>
    %c0_5 = arith.constant 0 : index
    %c0_6 = arith.constant 0 : index
    %c0_7 = arith.constant 0 : index
    %4 = vector.load %arg1[%c0_5, %c0_6, %c0_7] : memref<1x3x420xf32, #tpu.memory_space<vmem>>, vector<1x3x404xf32>
    %5 = vector.shape_cast %4 : vector<1x3x404xf32> to vector<3x404xf32>
    %6 = vector.extract_strided_slice %5 {offsets = [0, 0], sizes = [3, 320], strides = [1, 1]} : vector<3x404xf32> to vector<3x320xf32>
    %c0_8 = arith.constant 0 : index
    %c0_9 = arith.constant 0 : index
    %7 = vector.load %arg5[%c0_8, %c0_9] : memref<200x320xf32, #tpu.memory_space<vmem>>, vector<3x320xf32>
    tpu.vector_store %arg5[%c0_8, %c0_9], %6 {strides = array<i32>} : memref<200x320xf32, #tpu.memory_space<vmem>>, vector<3x320xf32>,
    %8 = vector.extract_strided_slice %5 {offsets = [0, 1], sizes = [3, 320], strides = [1, 1]} : vector<3x404xf32> to vector<3x320xf32>
    %c8 = arith.constant 8 : index
    %c0_10 = arith.constant 0 : index
    %9 = vector.load %arg5[%c8, %c0_10] : memref<200x320xf32, #tpu.memory_space<vmem>>, vector<3x320xf32>
    tpu.vector_store %arg5[%c8, %c0_10], %8 {strides = array<i32>} : memref<200x320xf32, #tpu.memory_space<vmem>>, vector<3x320xf32>,
    %10 = vector.extract_strided_slice %5 {offsets = [0, 2], sizes = [3, 320], strides = [1, 1]} : vector<3x404xf32> to vector<3x320xf32>
    %c16 = arith.constant 16 : index
    %c0_11 = arith.constant 0 : index
    %11 = vector.load %arg5[%c16, %c0_11] : memref<200x320xf32, #tpu.memory_space<vmem>>, vector<3x320xf32>
    tpu.vector_store %arg5[%c16, %c0_11], %10 {strides = array<i32>} : memref<200x320xf32, #tpu.memory_space<vmem>>, vector<3x320xf32>,
    %12 = vector.extract_strided_slice %5 {offsets = [0, 3], sizes = [3, 320], strides = [1, 1]} : vector<3x404xf32> to vector<3x320xf32>
    %c24 = arith.constant 24 : index
    %c0_12 = arith.constant 0 : index
    %13 = vector.load %arg5[%c24, %c0_12] : memref<200x320xf32, #tpu.memory_space<vmem>>, vector<3x320xf32>
    tpu.vector_store %arg5[%c24, %c0_12], %12 {strides = array<i32>} : memref<200x320xf32, #tpu.memory_space<vmem>>, vector<3x320xf32>,
    %14 = vector.extract_strided_slice %5 {offsets = [0, 4], sizes = [3, 320], strides = [1, 1]} : vector<3x404xf32> to vector<3x320xf32>
    %c32 = arith.constant 32 : index
    %c0_13 = arith.constant 0 : index
    %15 = vector.load %arg5[%c32, %c0_13] : memref<200x320xf32, #tpu.memory_space<vmem>>, vector<3x320xf32>
    tpu.vector_store %arg5[%c32, %c0_13], %14 {strides = array<i32>} : memref<200x320xf32, #tpu.memory_space<vmem>>, vector<3x320xf32>,
    %16 = vector.extract_strided_slice %5 {offsets = [0, 20], sizes = [3, 320], strides = [1, 1]} : vector<3x404xf32> to vector<3x320xf32>
    %c40 = arith.constant 40 : index
    %c0_14 = arith.constant 0 : index
    %17 = vector.load %arg5[%c40, %c0_14] : memref<200x320xf32, #tpu.memory_space<vmem>>, vector<3x320xf32>
    tpu.vector_store %arg5[%c40, %c0_14], %16 {strides = array<i32>} : memref<200x320xf32, #tpu.memory_space<vmem>>, vector<3x320xf32>,
    %18 = vector.extract_strided_slice %5 {offsets = [0, 21], sizes = [3, 320], strides = [1, 1]} : vector<3x404xf32> to vector<3x320xf32>
    %c48 = arith.constant 48 : index
    %c0_15 = arith.constant 0 : index
    %19 = vector.load %arg5[%c48, %c0_15] : memref<200x320xf32, #tpu.memory_space<vmem>>, vector<3x320xf32>
    tpu.vector_store %arg5[%c48, %c0_15], %18 {strides = array<i32>} : memref<200x320xf32, #tpu.memory_space<vmem>>, vector<3x320xf32>,
    %20 = vector.extract_strided_slice %5 {offsets = [0, 22], sizes = [3, 320], strides = [1, 1]} : vector<3x404xf32> to vector<3x320xf32>
    %c56 = arith.constant 56 : index
    %c0_16 = arith.constant 0 : index
    %21 = vector.load %arg5[%c56, %c0_16] : memref<200x320xf32, #tpu.memory_space<vmem>>, vector<3x320xf32>
    tpu.vector_store %arg5[%c56, %c0_16], %20 {strides = array<i32>} : memref<200x320xf32, #tpu.memory_space<vmem>>, vector<3x320xf32>,
    %22 = vector.extract_strided_slice %5 {offsets = [0, 23], sizes = [3, 320], strides = [1, 1]} : vector<3x404xf32> to vector<3x320xf32>
    %c64 = arith.constant 64 : index
    %c0_17 = arith.constant 0 : index
    %23 = vector.load %arg5[%c64, %c0_17] : memref<200x320xf32, #tpu.memory_space<vmem>>, vector<3x320xf32>
    tpu.vector_store %arg5[%c64, %c0_17], %22 {strides = array<i32>} : memref<200x320xf32, #tpu.memory_space<vmem>>, vector<3x320xf32>,
    %24 = vector.extract_strided_slice %5 {offsets = [0, 24], sizes = [3, 320], strides = [1, 1]} : vector<3x404xf32> to vector<3x320xf32>
    %c72 = arith.constant 72 : index
    %c0_18 = arith.constant 0 : index
    %25 = vector.load %arg5[%c72, %c0_18] : memref<200x320xf32, #tpu.memory_space<vmem>>, vector<3x320xf32>
    tpu.vector_store %arg5[%c72, %c0_18], %24 {strides = array<i32>} : memref<200x320xf32, #tpu.memory_space<vmem>>, vector<3x320xf32>,
    %26 = vector.extract_strided_slice %5 {offsets = [0, 40], sizes = [3, 320], strides = [1, 1]} : vector<3x404xf32> to vector<3x320xf32>
    %c80 = arith.constant 80 : index
    %c0_19 = arith.constant 0 : index
    %27 = vector.load %arg5[%c80, %c0_19] : memref<200x320xf32, #tpu.memory_space<vmem>>, vector<3x320xf32>
    tpu.vector_store %arg5[%c80, %c0_19], %26 {strides = array<i32>} : memref<200x320xf32, #tpu.memory_space<vmem>>, vector<3x320xf32>,
    %28 = vector.extract_strided_slice %5 {offsets = [0, 41], sizes = [3, 320], strides = [1, 1]} : vector<3x404xf32> to vector<3x320xf32>
    %c88 = arith.constant 88 : index
    %c0_20 = arith.constant 0 : index
    %29 = vector.load %arg5[%c88, %c0_20] : memref<200x320xf32, #tpu.memory_space<vmem>>, vector<3x320xf32>
    tpu.vector_store %arg5[%c88, %c0_20], %28 {strides = array<i32>} : memref<200x320xf32, #tpu.memory_space<vmem>>, vector<3x320xf32>,
    %30 = vector.extract_strided_slice %5 {offsets = [0, 42], sizes = [3, 320], strides = [1, 1]} : vector<3x404xf32> to vector<3x320xf32>
    %c96 = arith.constant 96 : index
    %c0_21 = arith.constant 0 : index
    %31 = vector.load %arg5[%c96, %c0_21] : memref<200x320xf32, #tpu.memory_space<vmem>>, vector<3x320xf32>
    tpu.vector_store %arg5[%c96, %c0_21], %30 {strides = array<i32>} : memref<200x320xf32, #tpu.memory_space<vmem>>, vector<3x320xf32>,
    %32 = vector.extract_strided_slice %5 {offsets = [0, 43], sizes = [3, 320], strides = [1, 1]} : vector<3x404xf32> to vector<3x320xf32>
    %c104 = arith.constant 104 : index
    %c0_22 = arith.constant 0 : index
    %33 = vector.load %arg5[%c104, %c0_22] : memref<200x320xf32, #tpu.memory_space<vmem>>, vector<3x320xf32>
    tpu.vector_store %arg5[%c104, %c0_22], %32 {strides = array<i32>} : memref<200x320xf32, #tpu.memory_space<vmem>>, vector<3x320xf32>,
    %34 = vector.extract_strided_slice %5 {offsets = [0, 44], sizes = [3, 320], strides = [1, 1]} : vector<3x404xf32> to vector<3x320xf32>
    %c112 = arith.constant 112 : index
    %c0_23 = arith.constant 0 : index
    %35 = vector.load %arg5[%c112, %c0_23] : memref<200x320xf32, #tpu.memory_space<vmem>>, vector<3x320xf32>
    tpu.vector_store %arg5[%c112, %c0_23], %34 {strides = array<i32>} : memref<200x320xf32, #tpu.memory_space<vmem>>, vector<3x320xf32>,
    %36 = vector.extract_strided_slice %5 {offsets = [0, 60], sizes = [3, 320], strides = [1, 1]} : vector<3x404xf32> to vector<3x320xf32>
    %c120 = arith.constant 120 : index
    %c0_24 = arith.constant 0 : index
    %37 = vector.load %arg5[%c120, %c0_24] : memref<200x320xf32, #tpu.memory_space<vmem>>, vector<3x320xf32>
    tpu.vector_store %arg5[%c120, %c0_24], %36 {strides = array<i32>} : memref<200x320xf32, #tpu.memory_space<vmem>>, vector<3x320xf32>,
    %38 = vector.extract_strided_slice %5 {offsets = [0, 61], sizes = [3, 320], strides = [1, 1]} : vector<3x404xf32> to vector<3x320xf32>
    %c128 = arith.constant 128 : index
    %c0_25 = arith.constant 0 : index
    %39 = vector.load %arg5[%c128, %c0_25] : memref<200x320xf32, #tpu.memory_space<vmem>>, vector<3x320xf32>
    tpu.vector_store %arg5[%c128, %c0_25], %38 {strides = array<i32>} : memref<200x320xf32, #tpu.memory_space<vmem>>, vector<3x320xf32>,
    %40 = vector.extract_strided_slice %5 {offsets = [0, 62], sizes = [3, 320], strides = [1, 1]} : vector<3x404xf32> to vector<3x320xf32>
    %c136 = arith.constant 136 : index
    %c0_26 = arith.constant 0 : index
    %41 = vector.load %arg5[%c136, %c0_26] : memref<200x320xf32, #tpu.memory_space<vmem>>, vector<3x320xf32>
    tpu.vector_store %arg5[%c136, %c0_26], %40 {strides = array<i32>} : memref<200x320xf32, #tpu.memory_space<vmem>>, vector<3x320xf32>,
    %42 = vector.extract_strided_slice %5 {offsets = [0, 63], sizes = [3, 320], strides = [1, 1]} : vector<3x404xf32> to vector<3x320xf32>
    %c144 = arith.constant 144 : index
    %c0_27 = arith.constant 0 : index
    %43 = vector.load %arg5[%c144, %c0_27] : memref<200x320xf32, #tpu.memory_space<vmem>>, vector<3x320xf32>
    tpu.vector_store %arg5[%c144, %c0_27], %42 {strides = array<i32>} : memref<200x320xf32, #tpu.memory_space<vmem>>, vector<3x320xf32>,
    %44 = vector.extract_strided_slice %5 {offsets = [0, 64], sizes = [3, 320], strides = [1, 1]} : vector<3x404xf32> to vector<3x320xf32>
    %c152 = arith.constant 152 : index
    %c0_28 = arith.constant 0 : index
    %45 = vector.load %arg5[%c152, %c0_28] : memref<200x320xf32, #tpu.memory_space<vmem>>, vector<3x320xf32>
    tpu.vector_store %arg5[%c152, %c0_28], %44 {strides = array<i32>} : memref<200x320xf32, #tpu.memory_space<vmem>>, vector<3x320xf32>,
    %46 = vector.extract_strided_slice %5 {offsets = [0, 80], sizes = [3, 320], strides = [1, 1]} : vector<3x404xf32> to vector<3x320xf32>
    %c160 = arith.constant 160 : index
    %c0_29 = arith.constant 0 : index
    %47 = vector.load %arg5[%c160, %c0_29] : memref<200x320xf32, #tpu.memory_space<vmem>>, vector<3x320xf32>
    tpu.vector_store %arg5[%c160, %c0_29], %46 {strides = array<i32>} : memref<200x320xf32, #tpu.memory_space<vmem>>, vector<3x320xf32>,
    %48 = vector.extract_strided_slice %5 {offsets = [0, 81], sizes = [3, 320], strides = [1, 1]} : vector<3x404xf32> to vector<3x320xf32>
    %c168 = arith.constant 168 : index
    %c0_30 = arith.constant 0 : index
    %49 = vector.load %arg5[%c168, %c0_30] : memref<200x320xf32, #tpu.memory_space<vmem>>, vector<3x320xf32>
    tpu.vector_store %arg5[%c168, %c0_30], %48 {strides = array<i32>} : memref<200x320xf32, #tpu.memory_space<vmem>>, vector<3x320xf32>,
    %50 = vector.extract_strided_slice %5 {offsets = [0, 82], sizes = [3, 320], strides = [1, 1]} : vector<3x404xf32> to vector<3x320xf32>
    %c176 = arith.constant 176 : index
    %c0_31 = arith.constant 0 : index
    %51 = vector.load %arg5[%c176, %c0_31] : memref<200x320xf32, #tpu.memory_space<vmem>>, vector<3x320xf32>
    tpu.vector_store %arg5[%c176, %c0_31], %50 {strides = array<i32>} : memref<200x320xf32, #tpu.memory_space<vmem>>, vector<3x320xf32>,
    %52 = vector.extract_strided_slice %5 {offsets = [0, 83], sizes = [3, 320], strides = [1, 1]} : vector<3x404xf32> to vector<3x320xf32>
    %c184 = arith.constant 184 : index
    %c0_32 = arith.constant 0 : index
    %53 = vector.load %arg5[%c184, %c0_32] : memref<200x320xf32, #tpu.memory_space<vmem>>, vector<3x320xf32>
    tpu.vector_store %arg5[%c184, %c0_32], %52 {strides = array<i32>} : memref<200x320xf32, #tpu.memory_space<vmem>>, vector<3x320xf32>,
    %54 = vector.extract_strided_slice %5 {offsets = [0, 84], sizes = [3, 320], strides = [1, 1]} : vector<3x404xf32> to vector<3x320xf32>
    %c192 = arith.constant 192 : index
    %c0_33 = arith.constant 0 : index
    %55 = vector.load %arg5[%c192, %c0_33] : memref<200x320xf32, #tpu.memory_space<vmem>>, vector<3x320xf32>
    tpu.vector_store %arg5[%c192, %c0_33], %54 {strides = array<i32>} : memref<200x320xf32, #tpu.memory_space<vmem>>, vector<3x320xf32>,
    %c0_34 = arith.constant 0 : index
    %c0_35 = arith.constant 0 : index
    %56 = vector.load %arg5[%c0_34, %c0_35] : memref<200x320xf32, #tpu.memory_space<vmem>>, vector<200x320xf32>
    %cst_36 = arith.constant dense<0.000000e+00> : vector<8x320xf32>
    %57 = tpu.matmul %2, %56, %cst_36 {dimension_numbers = #tpu.dot_dimension_numbers<[1], [0], [0], [1], [0, 0, 1, 1], [], []>} : vector<8x200xf32>, vector<200x320xf32>, vector<8x320xf32> -> vector<8x320xf32>
    %58 = vector.extract_strided_slice %57 {offsets = [0, 0], sizes = [6, 320], strides = [1, 1]} : vector<8x320xf32> to vector<6x320xf32>
    %59 = vector.extract_strided_slice %3 {offsets = [0, 0], sizes = [6, 1], strides = [1, 1]} : vector<8x1xf32> to vector<6x1xf32>
    %60 = vector.broadcast %59 : vector<6x1xf32> to vector<6x320xf32>
    %61 = arith.addf %58, %60 : vector<6x320xf32>
    %cst_37 = arith.constant 0.000000e+00 : f32
    %62 = vector.broadcast %cst_37 : f32 to vector<6x320xf32>
    %63 = arith.maximumf %61, %62 : vector<6x320xf32>
    %c0_38 = arith.constant 0 : index
    %c0_39 = arith.constant 0 : index
    %c0_40 = arith.constant 0 : index
    %64 = vector.load %arg4[%c0_38, %c0_39, %c0_40] : memref<1x6x320xf32, #tpu.memory_space<vmem>>, vector<1x6x320xf32>
    %65 = vector.shape_cast %64 : vector<1x6x320xf32> to vector<6x320xf32>
    %66 = vector.shape_cast %63 : vector<6x320xf32> to vector<1x6x320xf32>
    tpu.vector_store %arg4[%c0_38, %c0_39, %c0_40], %66 {strides = array<i32>} : memref<1x6x320xf32, #tpu.memory_space<vmem>>, vector<1x6x320xf32>,
    return
  }
  func.func @transform_0(%arg0: i32) -> (i32, i32, i32) {
    %c0_i32 = arith.constant 0 : i32
    %c0_i32_0 = arith.constant 0 : i32
    %c0_i32_1 = arith.constant 0 : i32
    return %arg0, %c0_i32, %c0_i32_0 : i32, i32, i32
  }
  func.func @transform_1(%arg0: i32) -> (i32, i32) {
    %c0_i32 = arith.constant 0 : i32
    %c0_i32_0 = arith.constant 0 : i32
    %c0_i32_1 = arith.constant 0 : i32
    return %c0_i32, %c0_i32_0 : i32, i32
  }
  func.func @transform_2(%arg0: i32) -> (i32, i32) {
    %c0_i32 = arith.constant 0 : i32
    %c0_i32_0 = arith.constant 0 : i32
    %c0_i32_1 = arith.constant 0 : i32
    return %c0_i32, %c0_i32_0 : i32, i32
  }
  func.func @transform_3(%arg0: i32) -> (i32, i32, i32) {
    %c0_i32 = arith.constant 0 : i32
    %c0_i32_0 = arith.constant 0 : i32
    %c0_i32_1 = arith.constant 0 : i32
    return %arg0, %c0_i32, %c0_i32_0 : i32, i32, i32
  }
}

</mosaic_0001>

<llo_original>
// kernel: model_forward.1
$region0: #{model_forward.1}
  #allocation0 [shape = 'u32[]', space=smem, size = 0x4, offset = 0x4, fixed_abs, tag = 'smem constant byte address 0x4 - core index']
  #allocation1 [shape = 'u32[144,128]{1,0:T(1,128)}', space=vmem, size = 0x12000, scoped, tag = 'internal scratch']
  #allocation2 [shape = 'f32[200,320]{1,0:T(8,128)}', space=vmem, size = 0x4b000, scoped, tag = 'scratch operand']
  %s0 = inlined_call_operand.vmem [shape: f32[2,3,420], index: 0, kind: input, shape index: {}]
  %s1 = inlined_call_operand.vmem [shape: f32[8,200], index: 1, kind: input, shape index: {}]
  %s2 = inlined_call_operand.vmem [shape: f32[8,1], index: 2, kind: input, shape index: {}]
  %s3 = inlined_call_operand.vmem [shape: f32[2,6,320], index: 3, kind: output, shape index: {}]
  %s4 = sld [smem:[#allocation0]]
  $region45: #{model_forward.1} parent=0
    _
  %s6 = ssub.s32 1, %s4
  %s7 = scalar_select 0, %s6, %s4
  loop: start=0, step=1, limit=4
  $region2: #{model_forward.1} parent=0 // loop_pre_header
    _
  $region3: #{model_forward.1} parent=0 // loop_header
    %s9 = sphi 0, %s13
    %p10 = scmp.ge.s32.totalorder %s9, 4
    %s19 = sphi 0, %s21
    %s22 = sphi 0, %s19
    %s23 = sphi 0, %s22
    %s39 = sphi 0, %s23
    %s43 = sphi 0, %s43
    %s45 = sphi 0, %s43
    %s46 = sphi 0, %s45
    %s60 = sphi 0, %s46
    %s64 = sphi 0, %s64
    %s66 = sphi 0, %s64
    %s67 = sphi 0, %s66
    %s81 = sphi 0, %s67
    %s87 = sphi 0, %s89
    %s90 = sphi 0, %s87
    %s91 = sphi 0, %s90
    %s107 = sphi 0, %s91
  $region4: #{model_forward.1} parent=0 // loop_header_branch
    %12 = sbr.rel (%p10) target = $region8
  $region5: #{model_forward.1} parent=0 // loop_body
    %s14 = ssub.s32 %s9, 1
    %s15 = ssub.s32 %s9, 2
    %s16 = sadd.s32 %s9, 1
    %s17 = ssub.s32 %s9, %s16
    %p18 = scmp.eq.s32.totalorder %s17, 0
    %s20 = sadd.s32 %s19, 1
    %s21 = scalar_select %p18, %s19, %s20
    %p24 = pneg %p18
    %p25 = scmp.eq.s32.totalorder %s9, 1
    %p26 = por %p24, %p25
    %p27 = scmp.ne.s32.totalorder %s19, %s22
    %p28 = scmp.eq.s32.totalorder %s9, 0
    %p29 = por %p27, %p28
    %p30 = scmp.ne.s32.totalorder %s19, %s22
    %p31 = scmp.eq.s32.totalorder %s14, 1
    %p32 = por %p30, %p31
    %p33 = scmp.ne.s32.totalorder %s22, %s23
    %p34 = scmp.eq.s32.totalorder %s14, 0
    %p35 = por %p33, %p34
    %p36 = scmp.ne.s32.totalorder %s22, %s23
    %p37 = scmp.eq.s32.totalorder %s15, 1
    %p38 = por %p36, %p37
    %p40 = scmp.ne.s32.totalorder %s23, %s39
    %p41 = scmp.eq.s32.totalorder %s15, 0
    %p42 = por %p40, %p41
    %s44 = sadd.s32 %s43, 1
    %p47 = scmp.eq.s32.totalorder %s9, 1
    %p48 = scmp.ne.s32.totalorder %s43, %s45
    %p49 = scmp.eq.s32.totalorder %s9, 0
    %p50 = por %p48, %p49
    %p51 = scmp.ne.s32.totalorder %s43, %s45
    %p52 = scmp.eq.s32.totalorder %s14, 1
    %p53 = por %p51, %p52
    %p54 = scmp.ne.s32.totalorder %s45, %s46
    %p55 = scmp.eq.s32.totalorder %s14, 0
    %p56 = por %p54, %p55
    %p57 = scmp.ne.s32.totalorder %s45, %s46
    %p58 = scmp.eq.s32.totalorder %s15, 1
    %p59 = por %p57, %p58
    %p61 = scmp.ne.s32.totalorder %s46, %s60
    %p62 = scmp.eq.s32.totalorder %s15, 0
    %p63 = por %p61, %p62
    %s65 = sadd.s32 %s64, 1
    %p68 = scmp.eq.s32.totalorder %s9, 1
    %p69 = scmp.ne.s32.totalorder %s64, %s66
    %p70 = scmp.eq.s32.totalorder %s9, 0
    %p71 = por %p69, %p70
    %p72 = scmp.ne.s32.totalorder %s64, %s66
    %p73 = scmp.eq.s32.totalorder %s14, 1
    %p74 = por %p72, %p73
    %p75 = scmp.ne.s32.totalorder %s66, %s67
    %p76 = scmp.eq.s32.totalorder %s14, 0
    %p77 = por %p75, %p76
    %p78 = scmp.ne.s32.totalorder %s66, %s67
    %p79 = scmp.eq.s32.totalorder %s15, 1
    %p80 = por %p78, %p79
    %p82 = scmp.ne.s32.totalorder %s67, %s81
    %p83 = scmp.eq.s32.totalorder %s15, 0
    %p84 = por %p82, %p83
    %s85 = ssub.s32 %s9, %s16
    %p86 = scmp.eq.s32.totalorder %s85, 0
    %s88 = sadd.s32 %s87, 1
    %s89 = scalar_select %p86, %s87, %s88
    %p92 = pneg %p86
    %p93 = scmp.eq.s32.totalorder %s9, 1
    %p94 = por %p92, %p93
    %p95 = scmp.ne.s32.totalorder %s87, %s90
    %p96 = scmp.eq.s32.totalorder %s9, 0
    %p97 = por %p95, %p96
    %p98 = scmp.ne.s32.totalorder %s87, %s90
    %p99 = scmp.eq.s32.totalorder %s14, 1
    %p100 = por %p98, %p99
    %p101 = scmp.ne.s32.totalorder %s90, %s91
    %p102 = scmp.eq.s32.totalorder %s14, 0
    %p103 = por %p101, %p102
    %p104 = scmp.ne.s32.totalorder %s90, %s91
    %p105 = scmp.eq.s32.totalorder %s15, 1
    %p106 = por %p104, %p105
    %p108 = scmp.ne.s32.totalorder %s91, %s107
    %p109 = scmp.eq.s32.totalorder %s15, 0
    %p110 = por %p108, %p109
    %p111 = scmp.le.s32.totalorder 1, %s9
    %p112 = scmp.lt.s32.totalorder %s9, 3
    %p113 = pnand %p111, %p112
    %p114 = pneg %p113
    // Predicated region
    $region9: #{model_forward.1} parent=5 // pred_check
      _
    $region10: #{model_forward.1} parent=5 // pred_check_branch
      %116 = sbr.rel (%p113) target = $region12
    $region11: #{model_forward.1} parent=5 // pred_region
      %s117 = ssub.s32 %s9, 1
      // Predicated region
      $region13: #{model_forward.1} parent=11 // pred_check
        %p118 = pneg %p56
      $region14: #{model_forward.1} parent=11 // pred_check_branch
        %120 = sbr.rel (%p118) target = $region16
      $region15: #{model_forward.1} parent=11 // pred_region
        _
      $region16: #{model_forward.1} parent=11 // pred_fallthru
        _
      // Predicated region
      $region17: #{model_forward.1} parent=11 // pred_check
        %p121 = pneg %p77
      $region18: #{model_forward.1} parent=11 // pred_check_branch
        %123 = sbr.rel (%p121) target = $region20
      $region19: #{model_forward.1} parent=11 // pred_region
        _
      $region20: #{model_forward.1} parent=11 // pred_fallthru
        _
    $region12: #{model_forward.1} parent=5 // pred_fallthru
      _
    %p124 = scmp.lt.s32.totalorder %s9, 2
    // Predicated region
    $region21: #{model_forward.1} parent=5 // pred_check
      %p125 = pneg %p124
    $region22: #{model_forward.1} parent=5 // pred_check_branch
      %127 = sbr.rel (%p125) target = $region24
    $region23: #{model_forward.1} parent=5 // pred_region
      // Predicated region
      $region25: #{model_forward.1} parent=23 // pred_check
        %p128 = pneg %p29
      $region26: #{model_forward.1} parent=23 // pred_check_branch
        %130 = sbr.rel (%p128) target = $region28
      $region27: #{model_forward.1} parent=23 // pred_region
        %p131 = scmp.lt.s32.totalorder %s9, 1
        %s132 = scalar_select %p131, %s9, 1
        %s133 = smul.addr %s132, 4
        %s134 = smul.addr %s133, 4
        %s135 = scalar_lea.vmem %s0, %s134
      $region28: #{model_forward.1} parent=23 // pred_fallthru
        _
    $region24: #{model_forward.1} parent=5 // pred_fallthru
      _
    %p136 = scmp.le.s32.totalorder 1, %s9
    %p137 = scmp.lt.s32.totalorder %s9, 3
    %p138 = pnand %p136, %p137
    %p139 = pneg %p138
    // Predicated region
    $region29: #{model_forward.1} parent=5 // pred_check
      _
    $region30: #{model_forward.1} parent=5 // pred_check_branch
      %141 = sbr.rel (%p138) target = $region32
    $region31: #{model_forward.1} parent=5 // pred_region
      %s142 = ssub.s32 %s9, 1
      %p143 = scmp.lt.s32.totalorder %s14, 1
      %s144 = scalar_select %p143, %s14, 1
      %s145 = smul.addr %s144, 4
      %s146 = smul.addr %s145, 4
      %s147 = scalar_lea.vmem %s0, %s146
      %p148 = pneg %p35
      %p149 = pneg %p32
      %p150 = pneg %p56
      %p151 = pneg %p53
      %p152 = pneg %p77
      %p153 = pneg %p74
      %p154 = pneg %p103
      %p155 = pneg %p100
      %p156 = scmp.lt.s32.totalorder %s14, 1
      %s157 = scalar_select %p156, %s14, 1
      %s158 = smul.addr %s157, 3
      %s159 = smul.addr %s158, 8
      %s160 = scalar_lea.vmem %s3, %s159
      %p161 = scmp.lt.s32.totalorder %s14, 1
      %s162 = scalar_select %p161, %s14, 1
      %s163 = smul.addr %s162, 4
      %s164 = smul.addr %s163, 4
      %s165 = scalar_lea.vmem %s0, %s164
      %p166 = scmp.lt.s32.totalorder %s14, 1
      %s167 = scalar_select %p166, %s14, 1
      %s168 = smul.addr %s167, 3
      %s169 = smul.addr %s168, 8
      %s170 = scalar_lea.vmem %s3, %s169
      %171 = vst [vmem:[#allocation2] sm:$0xff] 0.0
      %172 = vst [vmem:[#allocation2 + $0x8] sm:$0xff] 0.0
      %vm173 = vcmask 523264
      %174 = vst.msk [vmem:[#allocation2 + $0x10] sm:$0xff] %vm173, 0.0
      %175 = vst [vmem:[#allocation2 + $0x18] sm:$0xff] 0.0
      %176 = vst [vmem:[#allocation2 + $0x20] sm:$0xff] 0.0
      %177 = vst.msk [vmem:[#allocation2 + $0x28] sm:$0xff] %vm173, 0.0
      %178 = vst [vmem:[#allocation2 + $0x30] sm:$0xff] 0.0
      %179 = vst [vmem:[#allocation2 + $0x38] sm:$0xff] 0.0
      %180 = vst.msk [vmem:[#allocation2 + $0x40] sm:$0xff] %vm173, 0.0
      %181 = vst [vmem:[#allocation2 + $0x48] sm:$0xff] 0.0
      %182 = vst [vmem:[#allocation2 + $0x50] sm:$0xff] 0.0
      %183 = vst.msk [vmem:[#allocation2 + $0x58] sm:$0xff] %vm173, 0.0
      %184 = vst [vmem:[#allocation2 + $0x60] sm:$0xff] 0.0
      %185 = vst [vmem:[#allocation2 + $0x68] sm:$0xff] 0.0
      %186 = vst.msk [vmem:[#allocation2 + $0x70] sm:$0xff] %vm173, 0.0
      %187 = vst [vmem:[#allocation2 + $0x78] sm:$0xff] 0.0
      %188 = vst [vmem:[#allocation2 + $0x80] sm:$0xff] 0.0
      %189 = vst.msk [vmem:[#allocation2 + $0x88] sm:$0xff] %vm173, 0.0
      %190 = vst [vmem:[#allocation2 + $0x90] sm:$0xff] 0.0
      %191 = vst [vmem:[#allocation2 + $0x98] sm:$0xff] 0.0
      %192 = vst.msk [vmem:[#allocation2 + $0xa0] sm:$0xff] %vm173, 0.0
      %193 = vst [vmem:[#allocation2 + $0xa8] sm:$0xff] 0.0
      %194 = vst [vmem:[#allocation2 + $0xb0] sm:$0xff] 0.0
      %195 = vst.msk [vmem:[#allocation2 + $0xb8] sm:$0xff] %vm173, 0.0
      %196 = vst [vmem:[#allocation2 + $0xc0] sm:$0xff] 0.0
      %197 = vst [vmem:[#allocation2 + $0xc8] sm:$0xff] 0.0
      %198 = vst.msk [vmem:[#allocation2 + $0xd0] sm:$0xff] %vm173, 0.0
      %199 = vst [vmem:[#allocation2 + $0xd8] sm:$0xff] 0.0
      %200 = vst [vmem:[#allocation2 + $0xe0] sm:$0xff] 0.0
      %201 = vst.msk [vmem:[#allocation2 + $0xe8] sm:$0xff] %vm173, 0.0
      %202 = vst [vmem:[#allocation2 + $0xf0] sm:$0xff] 0.0
      %203 = vst [vmem:[#allocation2 + $0xf8] sm:$0xff] 0.0
      %204 = vst.msk [vmem:[#allocation2 + $0x100] sm:$0xff] %vm173, 0.0
      %205 = vst [vmem:[#allocation2 + $0x108] sm:$0xff] 0.0
      %206 = vst [vmem:[#allocation2 + $0x110] sm:$0xff] 0.0
      %207 = vst.msk [vmem:[#allocation2 + $0x118] sm:$0xff] %vm173, 0.0
      %208 = vst [vmem:[#allocation2 + $0x120] sm:$0xff] 0.0
      %209 = vst [vmem:[#allocation2 + $0x128] sm:$0xff] 0.0
      %210 = vst.msk [vmem:[#allocation2 + $0x130] sm:$0xff] %vm173, 0.0
      %211 = vst [vmem:[#allocation2 + $0x138] sm:$0xff] 0.0
      %212 = vst [vmem:[#allocation2 + $0x140] sm:$0xff] 0.0
      %213 = vst.msk [vmem:[#allocation2 + $0x148] sm:$0xff] %vm173, 0.0
      %214 = vst [vmem:[#allocation2 + $0x150] sm:$0xff] 0.0
      %215 = vst [vmem:[#allocation2 + $0x158] sm:$0xff] 0.0
      %216 = vst.msk [vmem:[#allocation2 + $0x160] sm:$0xff] %vm173, 0.0
      %217 = vst [vmem:[#allocation2 + $0x168] sm:$0xff] 0.0
      %218 = vst [vmem:[#allocation2 + $0x170] sm:$0xff] 0.0
      %219 = vst.msk [vmem:[#allocation2 + $0x178] sm:$0xff] %vm173, 0.0
      %220 = vst [vmem:[#allocation2 + $0x180] sm:$0xff] 0.0
      %221 = vst [vmem:[#allocation2 + $0x188] sm:$0xff] 0.0
      %222 = vst.msk [vmem:[#allocation2 + $0x190] sm:$0xff] %vm173, 0.0
      %223 = vst [vmem:[#allocation2 + $0x198] sm:$0xff] 0.0
      %224 = vst [vmem:[#allocation2 + $0x1a0] sm:$0xff] 0.0
      %225 = vst.msk [vmem:[#allocation2 + $0x1a8] sm:$0xff] %vm173, 0.0
      %226 = vst [vmem:[#allocation2 + $0x1b0] sm:$0xff] 0.0
      %227 = vst [vmem:[#allocation2 + $0x1b8] sm:$0xff] 0.0
      %228 = vst.msk [vmem:[#allocation2 + $0x1c0] sm:$0xff] %vm173, 0.0
      %229 = vst [vmem:[#allocation2 + $0x1c8] sm:$0xff] 0.0
      %230 = vst [vmem:[#allocation2 + $0x1d0] sm:$0xff] 0.0
      %231 = vst.msk [vmem:[#allocation2 + $0x1d8] sm:$0xff] %vm173, 0.0
      %232 = vst [vmem:[#allocation2 + $0x1e0] sm:$0xff] 0.0
      %233 = vst [vmem:[#allocation2 + $0x1e8] sm:$0xff] 0.0
      %234 = vst.msk [vmem:[#allocation2 + $0x1f0] sm:$0xff] %vm173, 0.0
      %235 = vst [vmem:[#allocation2 + $0x1f8] sm:$0xff] 0.0
      %236 = vst [vmem:[#allocation2 + $0x200] sm:$0xff] 0.0
      %237 = vst.msk [vmem:[#allocation2 + $0x208] sm:$0xff] %vm173, 0.0
      %238 = vst [vmem:[#allocation2 + $0x210] sm:$0xff] 0.0
      %239 = vst [vmem:[#allocation2 + $0x218] sm:$0xff] 0.0
      %240 = vst.msk [vmem:[#allocation2 + $0x220] sm:$0xff] %vm173, 0.0
      %241 = vst [vmem:[#allocation2 + $0x228] sm:$0xff] 0.0
      %242 = vst [vmem:[#allocation2 + $0x230] sm:$0xff] 0.0
      %243 = vst.msk [vmem:[#allocation2 + $0x238] sm:$0xff] %vm173, 0.0
      %244 = vst [vmem:[#allocation2 + $0x240] sm:$0xff] 0.0
      %245 = vst [vmem:[#allocation2 + $0x248] sm:$0xff] 0.0
      %246 = vst.msk [vmem:[#allocation2 + $0x250] sm:$0xff] %vm173, 0.0
      %v247 = vld [vmem:[%s1] sm:$0xff]
      %v248 = vld [vmem:[%s1 + $0x8] sm:$0xff]
      %v249 = vld [vmem:[%s2] sm:$0xff]
      %v250 = vld [vmem:[%s165] sm:$0x77]
      %v251 = vld [vmem:[%s165 + $0x8] sm:$0x77]
      %v254 = vcombine.high %v250, %v250
      %256 = vst [vmem:[#allocation2] sm:$0x7] %v250
      %257 = vst [vmem:[#allocation2 + $0x8] sm:$0x7] %v254
      %vm258 = vcmask 518144
      %259 = vst.msk [vmem:[#allocation2 + $0x10] sm:$0x7] %vm258, %v251
      %260 = vrot.lane.b32.xlu0 %v250, 127
      %v261 = vpop.permute.xlu0 %260
      %262 = vrot.lane.b32.xlu0 %v254, 127
      %v263 = vpop.permute.xlu0 %262
      %264 = vrot.lane.b32.xlu0 %v251, 127
      %v265 = vpop.permute.xlu0 %264
      %vm266 = vcmask 1039360
      %v267 = vsel %vm266, %v261, %v263
      %v268 = vsel %vm266, %v263, %v265
      %272 = vst [vmem:[#allocation2 + $0x18] sm:$0x7] %v267
      %273 = vst [vmem:[#allocation2 + $0x20] sm:$0x7] %v268
      %274 = vst.msk [vmem:[#allocation2 + $0x28] sm:$0x7] %vm258, %v265
      %275 = vrot.lane.b32.xlu0 %v250, 126
      %v276 = vpop.permute.xlu0 %275
      %277 = vrot.lane.b32.xlu0 %v254, 126
      %v278 = vpop.permute.xlu0 %277
      %279 = vrot.lane.b32.xlu0 %v251, 126
      %v280 = vpop.permute.xlu0 %279
      %vm281 = vcmask 1031168
      %v282 = vsel %vm281, %v276, %v278
      %v283 = vsel %vm281, %v278, %v280
      %287 = vst [vmem:[#allocation2 + $0x30] sm:$0x7] %v282
      %288 = vst [vmem:[#allocation2 + $0x38] sm:$0x7] %v283
      %289 = vst.msk [vmem:[#allocation2 + $0x40] sm:$0x7] %vm258, %v280
      %290 = vrot.lane.b32.xlu0 %v250, 125
      %v291 = vpop.permute.xlu0 %290
      %292 = vrot.lane.b32.xlu0 %v254, 125
      %v293 = vpop.permute.xlu0 %292
      %294 = vrot.lane.b32.xlu0 %v251, 125
      %v295 = vpop.permute.xlu0 %294
      %vm296 = vcmask 1022976
      %v297 = vsel %vm296, %v291, %v293
      %v298 = vsel %vm296, %v293, %v295
      %302 = vst [vmem:[#allocation2 + $0x48] sm:$0x7] %v297
      %303 = vst [vmem:[#allocation2 + $0x50] sm:$0x7] %v298
      %304 = vst.msk [vmem:[#allocation2 + $0x58] sm:$0x7] %vm258, %v295
      %305 = vrot.lane.b32.xlu0 %v250, 124
      %v306 = vpop.permute.xlu0 %305
      %307 = vrot.lane.b32.xlu0 %v254, 124
      %v308 = vpop.permute.xlu0 %307
      %309 = vrot.lane.b32.xlu0 %v251, 124
      %v310 = vpop.permute.xlu0 %309
      %vm311 = vcmask 1014784
      %v312 = vsel %vm311, %v306, %v308
      %v313 = vsel %vm311, %v308, %v310
      %317 = vst [vmem:[#allocation2 + $0x60] sm:$0x7] %v312
      %318 = vst [vmem:[#allocation2 + $0x68] sm:$0x7] %v313
      %319 = vst.msk [vmem:[#allocation2 + $0x70] sm:$0x7] %vm258, %v310
      %320 = vrot.lane.b32.xlu0 %v250, 108
      %v321 = vpop.permute.xlu0 %320
      %322 = vrot.lane.b32.xlu0 %v254, 108
      %v323 = vpop.permute.xlu0 %322
      %324 = vrot.lane.b32.xlu0 %v251, 108
      %v325 = vpop.permute.xlu0 %324
      %vm326 = vcmask 883712
      %v327 = vsel %vm326, %v321, %v323
      %v328 = vsel %vm326, %v323, %v325
      %332 = vst [vmem:[#allocation2 + $0x78] sm:$0x7] %v327
      %333 = vst [vmem:[#allocation2 + $0x80] sm:$0x7] %v328
      %334 = vst.msk [vmem:[#allocation2 + $0x88] sm:$0x7] %vm258, %v325
      %335 = vrot.lane.b32.xlu0 %v250, 107
      %v336 = vpop.permute.xlu0 %335
      %337 = vrot.lane.b32.xlu0 %v254, 107
      %v338 = vpop.permute.xlu0 %337
      %339 = vrot.lane.b32.xlu0 %v251, 107
      %v340 = vpop.permute.xlu0 %339
      %vm341 = vcmask 875520
      %v342 = vsel %vm341, %v336, %v338
      %v343 = vsel %vm341, %v338, %v340
      %347 = vst [vmem:[#allocation2 + $0x90] sm:$0x7] %v342
      %348 = vst [vmem:[#allocation2 + $0x98] sm:$0x7] %v343
      %349 = vst.msk [vmem:[#allocation2 + $0xa0] sm:$0x7] %vm258, %v340
      %350 = vrot.lane.b32.xlu0 %v250, 106
      %v351 = vpop.permute.xlu0 %350
      %352 = vrot.lane.b32.xlu0 %v254, 106
      %v353 = vpop.permute.xlu0 %352
      %354 = vrot.lane.b32.xlu0 %v251, 106
      %v355 = vpop.permute.xlu0 %354
      %vm356 = vcmask 867328
      %v357 = vsel %vm356, %v351, %v353
      %v358 = vsel %vm356, %v353, %v355
      %362 = vst [vmem:[#allocation2 + $0xa8] sm:$0x7] %v357
      %363 = vst [vmem:[#allocation2 + $0xb0] sm:$0x7] %v358
      %364 = vst.msk [vmem:[#allocation2 + $0xb8] sm:$0x7] %vm258, %v355
      %365 = vrot.lane.b32.xlu0 %v250, 105
      %v366 = vpop.permute.xlu0 %365
      %367 = vrot.lane.b32.xlu0 %v254, 105
      %v368 = vpop.permute.xlu0 %367
      %369 = vrot.lane.b32.xlu0 %v251, 105
      %v370 = vpop.permute.xlu0 %369
      %vm371 = vcmask 859136
      %v372 = vsel %vm371, %v366, %v368
      %v373 = vsel %vm371, %v368, %v370
      %377 = vst [vmem:[#allocation2 + $0xc0] sm:$0x7] %v372
      %378 = vst [vmem:[#allocation2 + $0xc8] sm:$0x7] %v373
      %379 = vst.msk [vmem:[#allocation2 + $0xd0] sm:$0x7] %vm258, %v370
      %380 = vrot.lane.b32.xlu0 %v250, 104
      %v381 = vpop.permute.xlu0 %380
      %382 = vrot.lane.b32.xlu0 %v254, 104
      %v383 = vpop.permute.xlu0 %382
      %384 = vrot.lane.b32.xlu0 %v251, 104
      %v385 = vpop.permute.xlu0 %384
      %vm386 = vcmask 850944
      %v387 = vsel %vm386, %v381, %v383
      %v388 = vsel %vm386, %v383, %v385
      %392 = vst [vmem:[#allocation2 + $0xd8] sm:$0x7] %v387
      %393 = vst [vmem:[#allocation2 + $0xe0] sm:$0x7] %v388
      %394 = vst.msk [vmem:[#allocation2 + $0xe8] sm:$0x7] %vm258, %v385
      %395 = vrot.lane.b32.xlu0 %v250, 88
      %v396 = vpop.permute.xlu0 %395
      %397 = vrot.lane.b32.xlu0 %v254, 88
      %v398 = vpop.permute.xlu0 %397
      %399 = vrot.lane.b32.xlu0 %v251, 88
      %v400 = vpop.permute.xlu0 %399
      %vm401 = vcmask 719872
      %v402 = vsel %vm401, %v396, %v398
      %v403 = vsel %vm401, %v398, %v400
      %407 = vst [vmem:[#allocation2 + $0xf0] sm:$0x7] %v402
      %408 = vst [vmem:[#allocation2 + $0xf8] sm:$0x7] %v403
      %409 = vst.msk [vmem:[#allocation2 + $0x100] sm:$0x7] %vm258, %v400
      %410 = vrot.lane.b32.xlu0 %v250, 87
      %v411 = vpop.permute.xlu0 %410
      %412 = vrot.lane.b32.xlu0 %v254, 87
      %v413 = vpop.permute.xlu0 %412
      %414 = vrot.lane.b32.xlu0 %v251, 87
      %v415 = vpop.permute.xlu0 %414
      %vm416 = vcmask 711680
      %v417 = vsel %vm416, %v411, %v413
      %v418 = vsel %vm416, %v413, %v415
      %422 = vst [vmem:[#allocation2 + $0x108] sm:$0x7] %v417
      %423 = vst [vmem:[#allocation2 + $0x110] sm:$0x7] %v418
      %424 = vst.msk [vmem:[#allocation2 + $0x118] sm:$0x7] %vm258, %v415
      %425 = vrot.lane.b32.xlu0 %v250, 86
      %v426 = vpop.permute.xlu0 %425
      %427 = vrot.lane.b32.xlu0 %v254, 86
      %v428 = vpop.permute.xlu0 %427
      %429 = vrot.lane.b32.xlu0 %v251, 86
      %v430 = vpop.permute.xlu0 %429
      %vm431 = vcmask 703488
      %v432 = vsel %vm431, %v426, %v428
      %v433 = vsel %vm431, %v428, %v430
      %437 = vst [vmem:[#allocation2 + $0x120] sm:$0x7] %v432
      %438 = vst [vmem:[#allocation2 + $0x128] sm:$0x7] %v433
      %439 = vst.msk [vmem:[#allocation2 + $0x130] sm:$0x7] %vm258, %v430
      %440 = vrot.lane.b32.xlu0 %v250, 85
      %v441 = vpop.permute.xlu0 %440
      %442 = vrot.lane.b32.xlu0 %v254, 85
      %v443 = vpop.permute.xlu0 %442
      %444 = vrot.lane.b32.xlu0 %v251, 85
      %v445 = vpop.permute.xlu0 %444
      %vm446 = vcmask 695296
      %v447 = vsel %vm446, %v441, %v443
      %v448 = vsel %vm446, %v443, %v445
      %452 = vst [vmem:[#allocation2 + $0x138] sm:$0x7] %v447
      %453 = vst [vmem:[#allocation2 + $0x140] sm:$0x7] %v448
      %454 = vst.msk [vmem:[#allocation2 + $0x148] sm:$0x7] %vm258, %v445
      %455 = vrot.lane.b32.xlu0 %v250, 84
      %v456 = vpop.permute.xlu0 %455
      %457 = vrot.lane.b32.xlu0 %v254, 84
      %v458 = vpop.permute.xlu0 %457
      %459 = vrot.lane.b32.xlu0 %v251, 84
      %v460 = vpop.permute.xlu0 %459
      %vm461 = vcmask 687104
      %v462 = vsel %vm461, %v456, %v458
      %v463 = vsel %vm461, %v458, %v460
      %467 = vst [vmem:[#allocation2 + $0x150] sm:$0x7] %v462
      %468 = vst [vmem:[#allocation2 + $0x158] sm:$0x7] %v463
      %469 = vst.msk [vmem:[#allocation2 + $0x160] sm:$0x7] %vm258, %v460
      %470 = vrot.lane.b32.xlu0 %v250, 68
      %v471 = vpop.permute.xlu0 %470
      %472 = vrot.lane.b32.xlu0 %v254, 68
      %v473 = vpop.permute.xlu0 %472
      %474 = vrot.lane.b32.xlu0 %v251, 68
      %v475 = vpop.permute.xlu0 %474
      %vm476 = vcmask 556032
      %v477 = vsel %vm476, %v471, %v473
      %v478 = vsel %vm476, %v473, %v475
      %482 = vst [vmem:[#allocation2 + $0x168] sm:$0x7] %v477
      %483 = vst [vmem:[#allocation2 + $0x170] sm:$0x7] %v478
      %484 = vst.msk [vmem:[#allocation2 + $0x178] sm:$0x7] %vm258, %v475
      %485 = vrot.lane.b32.xlu0 %v250, 67
      %v486 = vpop.permute.xlu0 %485
      %487 = vrot.lane.b32.xlu0 %v254, 67
      %v488 = vpop.permute.xlu0 %487
      %489 = vrot.lane.b32.xlu0 %v251, 67
      %v490 = vpop.permute.xlu0 %489
      %vm491 = vcmask 547840
      %v492 = vsel %vm491, %v486, %v488
      %v493 = vsel %vm491, %v488, %v490
      %497 = vst [vmem:[#allocation2 + $0x180] sm:$0x7] %v492
      %498 = vst [vmem:[#allocation2 + $0x188] sm:$0x7] %v493
      %499 = vst.msk [vmem:[#allocation2 + $0x190] sm:$0x7] %vm258, %v490
      %500 = vrot.lane.b32.xlu0 %v250, 66
      %v501 = vpop.permute.xlu0 %500
      %502 = vrot.lane.b32.xlu0 %v254, 66
      %v503 = vpop.permute.xlu0 %502
      %504 = vrot.lane.b32.xlu0 %v251, 66
      %v505 = vpop.permute.xlu0 %504
      %vm506 = vcmask 539648
      %v507 = vsel %vm506, %v501, %v503
      %v508 = vsel %vm506, %v503, %v505
      %512 = vst [vmem:[#allocation2 + $0x198] sm:$0x7] %v507
      %513 = vst [vmem:[#allocation2 + $0x1a0] sm:$0x7] %v508
      %514 = vst.msk [vmem:[#allocation2 + $0x1a8] sm:$0x7] %vm258, %v505
      %515 = vrot.lane.b32.xlu0 %v250, 65
      %v516 = vpop.permute.xlu0 %515
      %517 = vrot.lane.b32.xlu0 %v254, 65
      %v518 = vpop.permute.xlu0 %517
      %519 = vrot.lane.b32.xlu0 %v251, 65
      %v520 = vpop.permute.xlu0 %519
      %vm521 = vcmask 531456
      %v522 = vsel %vm521, %v516, %v518
      %v523 = vsel %vm521, %v518, %v520
      %527 = vst [vmem:[#allocation2 + $0x1b0] sm:$0x7] %v522
      %528 = vst [vmem:[#allocation2 + $0x1b8] sm:$0x7] %v523
      %529 = vst.msk [vmem:[#allocation2 + $0x1c0] sm:$0x7] %vm258, %v520
      %530 = vrot.lane.b32.xlu0 %v250, 64
      %v531 = vpop.permute.xlu0 %530
      %532 = vrot.lane.b32.xlu0 %v254, 64
      %v533 = vpop.permute.xlu0 %532
      %534 = vrot.lane.b32.xlu0 %v251, 64
      %v535 = vpop.permute.xlu0 %534
      %v536 = vsel %vm173, %v531, %v533
      %v537 = vsel %vm173, %v533, %v535
      %541 = vst [vmem:[#allocation2 + $0x1c8] sm:$0x7] %v536
      %542 = vst [vmem:[#allocation2 + $0x1d0] sm:$0x7] %v537
      %543 = vst.msk [vmem:[#allocation2 + $0x1d8] sm:$0x7] %vm258, %v535
      %v544 = vcombine.high %v251, %v251
      %545 = vrot.lane.b32.xlu0 %v250, 48
      %v546 = vpop.permute.xlu0 %545
      %547 = vrot.lane.b32.xlu0 %v254, 48
      %v548 = vpop.permute.xlu0 %547
      %549 = vrot.lane.b32.xlu0 %v251, 48
      %v550 = vpop.permute.xlu0 %549
      %551 = vrot.lane.b32.xlu0 %v544, 48
      %v552 = vpop.permute.xlu0 %551
      %vm553 = vcmask 392192
      %v554 = vsel %vm553, %v546, %v548
      %v555 = vsel %vm553, %v548, %v550
      %v556 = vsel %vm553, %v550, %v552
      %560 = vst [vmem:[#allocation2 + $0x1e0] sm:$0x7] %v554
      %561 = vst [vmem:[#allocation2 + $0x1e8] sm:$0x7] %v555
      %562 = vst.msk [vmem:[#allocation2 + $0x1f0] sm:$0x7] %vm258, %v556
      %563 = vrot.lane.b32.xlu0 %v250, 47
      %v564 = vpop.permute.xlu0 %563
      %565 = vrot.lane.b32.xlu0 %v254, 47
      %v566 = vpop.permute.xlu0 %565
      %567 = vrot.lane.b32.xlu0 %v251, 47
      %v568 = vpop.permute.xlu0 %567
      %569 = vrot.lane.b32.xlu0 %v544, 47
      %v570 = vpop.permute.xlu0 %569
      %vm571 = vcmask 384000
      %v572 = vsel %vm571, %v564, %v566
      %v573 = vsel %vm571, %v566, %v568
      %v574 = vsel %vm571, %v568, %v570
      %578 = vst [vmem:[#allocation2 + $0x1f8] sm:$0x7] %v572
      %579 = vst [vmem:[#allocation2 + $0x200] sm:$0x7] %v573
      %580 = vst.msk [vmem:[#allocation2 + $0x208] sm:$0x7] %vm258, %v574
      %581 = vrot.lane.b32.xlu0 %v250, 46
      %v582 = vpop.permute.xlu0 %581
      %583 = vrot.lane.b32.xlu0 %v254, 46
      %v584 = vpop.permute.xlu0 %583
      %585 = vrot.lane.b32.xlu0 %v251, 46
      %v586 = vpop.permute.xlu0 %585
      %587 = vrot.lane.b32.xlu0 %v544, 46
      %v588 = vpop.permute.xlu0 %587
      %vm589 = vcmask 375808
      %v590 = vsel %vm589, %v582, %v584
      %v591 = vsel %vm589, %v584, %v586
      %v592 = vsel %vm589, %v586, %v588
      %596 = vst [vmem:[#allocation2 + $0x210] sm:$0x7] %v590
      %597 = vst [vmem:[#allocation2 + $0x218] sm:$0x7] %v591
      %598 = vst.msk [vmem:[#allocation2 + $0x220] sm:$0x7] %vm258, %v592
      %599 = vrot.lane.b32.xlu0 %v250, 45
      %v600 = vpop.permute.xlu0 %599
      %601 = vrot.lane.b32.xlu0 %v254, 45
      %v602 = vpop.permute.xlu0 %601
      %603 = vrot.lane.b32.xlu0 %v251, 45
      %v604 = vpop.permute.xlu0 %603
      %605 = vrot.lane.b32.xlu0 %v544, 45
      %v606 = vpop.permute.xlu0 %605
      %vm607 = vcmask 367616
      %v608 = vsel %vm607, %v600, %v602
      %v609 = vsel %vm607, %v602, %v604
      %v610 = vsel %vm607, %v604, %v606
      %614 = vst [vmem:[#allocation2 + $0x228] sm:$0x7] %v608
      %615 = vst [vmem:[#allocation2 + $0x230] sm:$0x7] %v609
      %616 = vst.msk [vmem:[#allocation2 + $0x238] sm:$0x7] %vm258, %v610
      %617 = vrot.lane.b32.xlu0 %v250, 44
      %v618 = vpop.permute.xlu0 %617
      %619 = vrot.lane.b32.xlu0 %v254, 44
      %v620 = vpop.permute.xlu0 %619
      %621 = vrot.lane.b32.xlu0 %v251, 44
      %v622 = vpop.permute.xlu0 %621
      %623 = vrot.lane.b32.xlu0 %v544, 44
      %v624 = vpop.permute.xlu0 %623
      %vm625 = vcmask 359424
      %v626 = vsel %vm625, %v618, %v620
      %v627 = vsel %vm625, %v620, %v622
      %v628 = vsel %vm625, %v622, %v624
      %632 = vst [vmem:[#allocation2 + $0x240] sm:$0x7] %v626
      %633 = vst [vmem:[#allocation2 + $0x248] sm:$0x7] %v627
      %634 = vst.msk [vmem:[#allocation2 + $0x250] sm:$0x7] %vm258, %v628
      %v635 = vld [vmem:[#allocation2] sm:$0xff]
      %v636 = vld [vmem:[#allocation2 + $0x8] sm:$0xff]
      %v637 = vld [vmem:[#allocation2 + $0x10] sm:$0xff]
      %v638 = vld [vmem:[#allocation2 + $0x18] sm:$0xff]
      %v639 = vld [vmem:[#allocation2 + $0x20] sm:$0xff]
      %v640 = vld [vmem:[#allocation2 + $0x28] sm:$0xff]
      %v641 = vld [vmem:[#allocation2 + $0x30] sm:$0xff]
      %v642 = vld [vmem:[#allocation2 + $0x38] sm:$0xff]
      %v643 = vld [vmem:[#allocation2 + $0x40] sm:$0xff]
      %v644 = vld [vmem:[#allocation2 + $0x48] sm:$0xff]
      %v645 = vld [vmem:[#allocation2 + $0x50] sm:$0xff]
      %v646 = vld [vmem:[#allocation2 + $0x58] sm:$0xff]
      %v647 = vld [vmem:[#allocation2 + $0x60] sm:$0xff]
      %v648 = vld [vmem:[#allocation2 + $0x68] sm:$0xff]
      %v649 = vld [vmem:[#allocation2 + $0x70] sm:$0xff]
      %v650 = vld [vmem:[#allocation2 + $0x78] sm:$0xff]
      %v651 = vld [vmem:[#allocation2 + $0x80] sm:$0xff]
      %v652 = vld [vmem:[#allocation2 + $0x88] sm:$0xff]
      %v653 = vld [vmem:[#allocation2 + $0x90] sm:$0xff]
      %v654 = vld [vmem:[#allocation2 + $0x98] sm:$0xff]
      %v655 = vld [vmem:[#allocation2 + $0xa0] sm:$0xff]
      %v656 = vld [vmem:[#allocation2 + $0xa8] sm:$0xff]
      %v657 = vld [vmem:[#allocation2 + $0xb0] sm:$0xff]
      %v658 = vld [vmem:[#allocation2 + $0xb8] sm:$0xff]
      %v659 = vld [vmem:[#allocation2 + $0xc0] sm:$0xff]
      %v660 = vld [vmem:[#allocation2 + $0xc8] sm:$0xff]
      %v661 = vld [vmem:[#allocation2 + $0xd0] sm:$0xff]
      %v662 = vld [vmem:[#allocation2 + $0xd8] sm:$0xff]
      %v663 = vld [vmem:[#allocation2 + $0xe0] sm:$0xff]
      %v664 = vld [vmem:[#allocation2 + $0xe8] sm:$0xff]
      %v665 = vld [vmem:[#allocation2 + $0xf0] sm:$0xff]
      %v666 = vld [vmem:[#allocation2 + $0xf8] sm:$0xff]
      %v667 = vld [vmem:[#allocation2 + $0x100] sm:$0xff]
      %v668 = vld [vmem:[#allocation2 + $0x108] sm:$0xff]
      %v669 = vld [vmem:[#allocation2 + $0x110] sm:$0xff]
      %v670 = vld [vmem:[#allocation2 + $0x118] sm:$0xff]
      %v671 = vld [vmem:[#allocation2 + $0x120] sm:$0xff]
      %v672 = vld [vmem:[#allocation2 + $0x128] sm:$0xff]
      %v673 = vld [vmem:[#allocation2 + $0x130] sm:$0xff]
      %v674 = vld [vmem:[#allocation2 + $0x138] sm:$0xff]
      %v675 = vld [vmem:[#allocation2 + $0x140] sm:$0xff]
      %v676 = vld [vmem:[#allocation2 + $0x148] sm:$0xff]
      %v677 = vld [vmem:[#allocation2 + $0x150] sm:$0xff]
      %v678 = vld [vmem:[#allocation2 + $0x158] sm:$0xff]
      %v679 = vld [vmem:[#allocation2 + $0x160] sm:$0xff]
      %v680 = vld [vmem:[#allocation2 + $0x168] sm:$0xff]
      %v681 = vld [vmem:[#allocation2 + $0x170] sm:$0xff]
      %v682 = vld [vmem:[#allocation2 + $0x178] sm:$0xff]
      %v683 = vld [vmem:[#allocation2 + $0x180] sm:$0xff]
      %v684 = vld [vmem:[#allocation2 + $0x188] sm:$0xff]
      %v685 = vld [vmem:[#allocation2 + $0x190] sm:$0xff]
      %v686 = vld [vmem:[#allocation2 + $0x198] sm:$0xff]
      %v687 = vld [vmem:[#allocation2 + $0x1a0] sm:$0xff]
      %v688 = vld [vmem:[#allocation2 + $0x1a8] sm:$0xff]
      %v689 = vld [vmem:[#allocation2 + $0x1b0] sm:$0xff]
      %v690 = vld [vmem:[#allocation2 + $0x1b8] sm:$0xff]
      %v691 = vld [vmem:[#allocation2 + $0x1c0] sm:$0xff]
      %v692 = vld [vmem:[#allocation2 + $0x1c8] sm:$0xff]
      %v693 = vld [vmem:[#allocation2 + $0x1d0] sm:$0xff]
      %v694 = vld [vmem:[#allocation2 + $0x1d8] sm:$0xff]
      %v695 = vld [vmem:[#allocation2 + $0x1e0] sm:$0xff]
      %v696 = vld [vmem:[#allocation2 + $0x1e8] sm:$0xff]
      %v697 = vld [vmem:[#allocation2 + $0x1f0] sm:$0xff]
      %v698 = vld [vmem:[#allocation2 + $0x1f8] sm:$0xff]
      %v699 = vld [vmem:[#allocation2 + $0x200] sm:$0xff]
      %v700 = vld [vmem:[#allocation2 + $0x208] sm:$0xff]
      %v701 = vld [vmem:[#allocation2 + $0x210] sm:$0xff]
      %v702 = vld [vmem:[#allocation2 + $0x218] sm:$0xff]
      %v703 = vld [vmem:[#allocation2 + $0x220] sm:$0xff]
      %v704 = vld [vmem:[#allocation2 + $0x228] sm:$0xff]
      %v705 = vld [vmem:[#allocation2 + $0x230] sm:$0xff]
      %v706 = vld [vmem:[#allocation2 + $0x238] sm:$0xff]
      %v707 = vld [vmem:[#allocation2 + $0x240] sm:$0xff]
      %v708 = vld [vmem:[#allocation2 + $0x248] sm:$0xff]
      %v709 = vld [vmem:[#allocation2 + $0x250] sm:$0xff]
      %vm710 = vcmask 588800
      %v712 = vsel %vm710, %v248, 0
      %714 = vmatprep.subr.mxu0 %v636
      %715 = vmatpush1.msra.mxu0 %v635
      %716 = vmatprep.subr.mxu0 %v639
      %717 = vmatpush1.msra.mxu0 %v638
      %718 = vmatprep.subr.mxu0 %v642
      %719 = vmatpush1.msra.mxu0 %v641
      %720 = vmatprep.subr.mxu0 %v645
      %721 = vmatpush1.msra.mxu0 %v644
      %722 = vmatprep.subr.mxu0 %v648
      %723 = vmatpush1.msra.mxu0 %v647
      %724 = vmatprep.subr.mxu0 %v651
      %725 = vmatpush1.msra.mxu0 %v650
      %726 = vmatprep.subr.mxu0 %v654
      %727 = vmatpush1.msra.mxu0 %v653
      %728 = vmatprep.subr.mxu0 %v657
      %729 = vmatpush1.msra.mxu0 %v656
      %730 = vmatprep.subr.mxu0 %v660
      %731 = vmatpush1.msra.mxu0 %v659
      %732 = vmatprep.subr.mxu0 %v663
      %733 = vmatpush1.msra.mxu0 %v662
      %734 = vmatprep.subr.mxu0 %v666
      %735 = vmatpush1.msra.mxu0 %v665
      %736 = vmatprep.subr.mxu0 %v669
      %737 = vmatpush1.msra.mxu0 %v668
      %738 = vmatprep.subr.mxu0 %v672
      %739 = vmatpush1.msra.mxu0 %v671
      %740 = vmatprep.subr.mxu0 %v675
      %741 = vmatpush1.msra.mxu0 %v674
      %742 = vmatprep.subr.mxu0 %v678
      %743 = vmatpush1.msra.mxu0 %v677
      %744 = vmatprep.subr.mxu0 %v681
      %745 = vmatpush1.msra.mxu0 %v680
      %746 = vmatprep.subr.mxu0 %v684
      %747 = vmatpush1.msra.mxu0 %v683
      %748 = vmatprep.subr.mxu0 %v687
      %749 = vmatpush1.msra.mxu0 %v686
      %750 = vmatprep.subr.mxu0 %v690
      %751 = vmatpush1.msra.mxu0 %v689
      %752 = vmatprep.subr.mxu0 %v693
      %753 = vmatpush1.msra.mxu0 %v692
      %754 = vmatprep.subr.mxu0 %v696
      %755 = vmatpush1.msra.mxu0 %v695
      %756 = vmatprep.subr.mxu0 %v699
      %757 = vmatpush1.msra.mxu0 %v698
      %758 = vmatprep.subr.mxu0 %v702
      %759 = vmatpush1.msra.mxu0 %v701
      %760 = vmatprep.subr.mxu0 %v705
      %761 = vmatpush1.msra.mxu0 %v704
      %762 = vmatprep.subr.mxu0 %v708
      %763 = vmatpush1.msra.mxu0 %v707
      %764 = vmatprep.subr.mxu0 0.0
      %765 = vmatpush1.msra.mxu0 0.0
      %766 = vmatprep.subr.mxu0 0.0
      %767 = vmatpush1.msra.mxu0 0.0
      %768 = vmatprep.subr.mxu0 0.0
      %769 = vmatpush1.msra.mxu0 0.0
      %770 = vmatprep.subr.mxu0 0.0
      %771 = vmatpush1.msra.mxu0 0.0
      %772 = vmatprep.subr.mxu0 0.0
      %773 = vmatpush1.msra.mxu0 0.0
      %774 = vmatprep.subr.mxu0 0.0
      %775 = vmatpush1.msra.mxu0 0.0
      %776 = vmatprep.subr.mxu0 0.0
      %777 = vmatpush1.msra.mxu0 0.0
      %778 = vmatprep.mubr.f32.mxu0 %v712
      %779 = vmatmul.mubr.f32.gmra.mrb[0].mxu0 %v247
      %v780 = vpop.f32.mrb[0].mxu0
      %v781 = vadd.f32 0.0, %v780
      %v782 = vpop.f32.mrb[0].mxu0
      %v783 = vadd.f32 0.0, %v782
      %784 = vdwg.mxu0
      %785 = vmatprep.subr.mxu0 0.0
      %786 = vmatpush1.msra.mxu0 %v637
      %787 = vmatprep.subr.mxu0 0.0
      %788 = vmatpush1.msra.mxu0 %v640
      %789 = vmatprep.subr.mxu0 0.0
      %790 = vmatpush1.msra.mxu0 %v643
      %791 = vmatprep.subr.mxu0 0.0
      %792 = vmatpush1.msra.mxu0 %v646
      %793 = vmatprep.subr.mxu0 0.0
      %794 = vmatpush1.msra.mxu0 %v649
      %795 = vmatprep.subr.mxu0 0.0
      %796 = vmatpush1.msra.mxu0 %v652
      %797 = vmatprep.subr.mxu0 0.0
      %798 = vmatpush1.msra.mxu0 %v655
      %799 = vmatprep.subr.mxu0 0.0
      %800 = vmatpush1.msra.mxu0 %v658
      %801 = vmatprep.subr.mxu0 0.0
      %802 = vmatpush1.msra.mxu0 %v661
      %803 = vmatprep.subr.mxu0 0.0
      %804 = vmatpush1.msra.mxu0 %v664
      %805 = vmatprep.subr.mxu0 0.0
      %806 = vmatpush1.msra.mxu0 %v667
      %807 = vmatprep.subr.mxu0 0.0
      %808 = vmatpush1.msra.mxu0 %v670
      %809 = vmatprep.subr.mxu0 0.0
      %810 = vmatpush1.msra.mxu0 %v673
      %811 = vmatprep.subr.mxu0 0.0
      %812 = vmatpush1.msra.mxu0 %v676
      %813 = vmatprep.subr.mxu0 0.0
      %814 = vmatpush1.msra.mxu0 %v679
      %815 = vmatprep.subr.mxu0 0.0
      %816 = vmatpush1.msra.mxu0 %v682
      %817 = vmatprep.subr.mxu0 0.0
      %818 = vmatpush1.msra.mxu0 %v685
      %819 = vmatprep.subr.mxu0 0.0
      %820 = vmatpush1.msra.mxu0 %v688
      %821 = vmatprep.subr.mxu0 0.0
      %822 = vmatpush1.msra.mxu0 %v691
      %823 = vmatprep.subr.mxu0 0.0
      %824 = vmatpush1.msra.mxu0 %v694
      %825 = vmatprep.subr.mxu0 0.0
      %826 = vmatpush1.msra.mxu0 %v697
      %827 = vmatprep.subr.mxu0 0.0
      %828 = vmatpush1.msra.mxu0 %v700
      %829 = vmatprep.subr.mxu0 0.0
      %830 = vmatpush1.msra.mxu0 %v703
      %831 = vmatprep.subr.mxu0 0.0
      %832 = vmatpush1.msra.mxu0 %v706
      %833 = vmatprep.subr.mxu0 0.0
      %834 = vmatpush1.msra.mxu0 %v709
      %835 = vmatprep.subr.mxu0 0.0
      %836 = vmatpush1.msra.mxu0 0.0
      %837 = vmatprep.subr.mxu0 0.0
      %838 = vmatpush1.msra.mxu0 0.0
      %839 = vmatprep.subr.mxu0 0.0
      %840 = vmatpush1.msra.mxu0 0.0
      %841 = vmatprep.subr.mxu0 0.0
      %842 = vmatpush1.msra.mxu0 0.0
      %843 = vmatprep.subr.mxu0 0.0
      %844 = vmatpush1.msra.mxu0 0.0
      %845 = vmatprep.subr.mxu0 0.0
      %846 = vmatpush1.msra.mxu0 0.0
      %847 = vmatprep.subr.mxu0 0.0
      %848 = vmatpush1.msra.mxu0 0.0
      %849 = vmatprep.mubr.f32.mxu0 %v712
      %850 = vmatmul.mubr.f32.gmra.mrb[0].mxu0 %v247
      %v851 = vpop.f32.mrb[0].mxu0
      %v852 = vadd.f32 0.0, %v851
      %v853 = vpop.f32.mrb[0].mxu0
      %854 = vdwg.mxu0
      %856 = vset.pattern.permute.xlu0 0
      %857 = vperm.xlu0 %856, %v249
      %v858 = vpop.permute.xlu0 %857
      %v860 = vadd.f32 %v781, %v858
      %v861 = vadd.f32 %v783, %v858
      %v862 = vadd.f32 %v852, %v858
      %v863 = vmax.f32 %v860, 0.0
      %v864 = vmax.f32 %v861, 0.0
      %v865 = vmax.f32 %v862, 0.0
      %866 = vst [vmem:[%s170] sm:$0x3f] %v863
      %867 = vst [vmem:[%s170 + $0x8] sm:$0x3f] %v864
      %vm868 = vcmask 521216
      %869 = vst.msk [vmem:[%s170 + $0x10] sm:$0x3f] %vm868, %v865
      %p870 = scmp.lt.s32.totalorder %s14, 1
      %s871 = scalar_select %p870, %s14, 1
      %s872 = smul.addr %s871, 3
      %s873 = smul.addr %s872, 8
      %s874 = scalar_lea.vmem %s3, %s873
      // Predicated region
      $region33: #{model_forward.1} parent=31 // pred_check
        %p875 = pneg %p100
      $region34: #{model_forward.1} parent=31 // pred_check_branch
        %877 = sbr.rel (%p875) target = $region36
      $region35: #{model_forward.1} parent=31 // pred_region
        _
      $region36: #{model_forward.1} parent=31 // pred_fallthru
        _
    $region32: #{model_forward.1} parent=5 // pred_fallthru
      _
    %p878 = scmp.le.s32.totalorder 2, %s9
    // Predicated region
    $region37: #{model_forward.1} parent=5 // pred_check
      %p879 = pneg %p878
    $region38: #{model_forward.1} parent=5 // pred_check_branch
      %881 = sbr.rel (%p879) target = $region40
    $region39: #{model_forward.1} parent=5 // pred_region
      %s882 = ssub.s32 %s9, 2
      // Predicated region
      $region41: #{model_forward.1} parent=39 // pred_check
        %p883 = pneg %p106
      $region42: #{model_forward.1} parent=39 // pred_check_branch
        %885 = sbr.rel (%p883) target = $region44
      $region43: #{model_forward.1} parent=39 // pred_region
        %p886 = scmp.lt.s32.totalorder %s15, 1
        %s887 = scalar_select %p886, %s15, 1
        %s888 = smul.addr %s887, 3
        %s889 = smul.addr %s888, 8
        %s890 = scalar_lea.vmem %s3, %s889
      $region44: #{model_forward.1} parent=39 // pred_fallthru
        _
    $region40: #{model_forward.1} parent=5 // pred_fallthru
      _
  $region6: #{model_forward.1} parent=0 // loop_footer
    %s13 = sadd.s32 1, %s9
  $region7: #{model_forward.1} parent=0 // loop_footer_branch
    %8 = sbr.rel target = $region3
  $region8: #{model_forward.1} parent=0 // loop_exit
    _

</llo_original>
